<compile_context>
chip_gen: v7x
topology: tpu7x:2x2x1
jax: 0.10.0
libtpu: 0.0.40
codegen_flags: <defaults>
</compile_context>

<pallas_src>
import jax
import jax.numpy as jnp
from jax.experimental import pallas as pl
from jax.experimental.pallas import tpu as pltpu

_CLASS_PAD = 128  # lane-dense padded class dimension


def _round_up(x, m):
    return ((x + m - 1) // m) * m


def bow_kernel(ids_ref, fused_ref, bias_ref, out_ref):
    """Grid = (batch tiles,).

    ids_ref  : SMEM [B_pad, L] int32 (scalar prefetch)
    fused_ref: VMEM [V_pad, 128] f32 (resident, fetched once)
    bias_ref : VMEM [1, 128] f32 (resident)
    out_ref  : VMEM [bt, 128] f32 (this batch tile's output rows)
    """
    bt = out_ref.shape[0]            # static
    L = ids_ref.shape[1]             # static
    v_max = fused_ref.shape[0] - 1   # static
    base = pl.program_id(0) * bt     # first global batch row of this tile
    bias = bias_ref[...]             # (1, 128) f32

    def row_body(r, carry):
        acc = bias
        for l in range(L):           # L is small & static -> unrolled
            tok = jnp.clip(ids_ref[base + r, l], 0, v_max)   # clamp, not raise
            acc = acc + fused_ref[pl.ds(tok, 1), :]          # gather one fused row
        out_ref[pl.ds(r, 1), :] = acc
        return carry

    jax.lax.fori_loop(0, bt, row_body, 0)


def make_bow_forward(emb_table, w, b, *, bt=128):
    """Precompute fused classifier weights once; return a forward(ids) closure."""
    V, E = emb_table.shape
    C = w.shape[0]
    assert C <= _CLASS_PAD

    # One-time algebraic fusion (weight-only precompute, reused across calls).
    fused = jnp.dot(emb_table.astype(jnp.float32), w.T.astype(jnp.float32))  # [V, C]

    v_pad = _round_up(V, 8)
    fused_p = jnp.zeros((v_pad, _CLASS_PAD), jnp.float32).at[:V, :C].set(fused)
    bias_p = jnp.zeros((1, _CLASS_PAD), jnp.float32).at[0, :C].set(
        b.astype(jnp.float32))

    max_bt = int(bt)

    @jax.jit
    def forward(ids):
        ids = ids.astype(jnp.int32)
        B, L = ids.shape
        # Batch tile: one grid step for tiny batches; up to `max_bt` rows per step
        # for realistic batches (multiple tiles let the "parallel" axis shard
        # across v7x's two TensorCores).
        tile = min(max_bt, _round_up(B, 8))
        nb = pl.cdiv(B, tile)
        b_pad = nb * tile
        # Pad trailing batch rows with id 0 (a valid row); their outputs are
        # discarded by the [:B] slice below.
        ids_p = jnp.zeros((b_pad, L), jnp.int32).at[:B, :].set(ids)

        out = pl.pallas_call(
            bow_kernel,
            out_shape=jax.ShapeDtypeStruct((b_pad, _CLASS_PAD), jnp.float32),
            grid_spec=pltpu.PrefetchScalarGridSpec(
                num_scalar_prefetch=1,        # ids -> SMEM, visible to the kernel
                grid=(nb,),
                in_specs=[
                    # fused table: full array, constant block index -> DMA'd once,
                    # VMEM-resident across all batch tiles.
                    pl.BlockSpec((v_pad, _CLASS_PAD), lambda bi, ids_s: (0, 0)),
                    # bias, resident.
                    pl.BlockSpec((1, _CLASS_PAD), lambda bi, ids_s: (0, 0)),
                ],
                out_specs=pl.BlockSpec((tile, _CLASS_PAD),
                                       lambda bi, ids_s: (bi, 0)),
            ),
            compiler_params=pltpu.CompilerParams(
                dimension_semantics=("parallel",)),
        )(ids_p, fused_p, bias_p)
        return out[:B, :C]  # drop batch + lane padding outside the kernel

    return forward


if __name__ == "__main__":
    # Small, deterministic setup consistent with the module:
    # vocab V=64, embedding dim E=32, batch B=2, sequence length L=8, 5 classes.
    V, E, B, L = 64, 32, 2, 8
    key = jax.random.PRNGKey(0)
    k_emb, k_ids, k_w, k_b = jax.random.split(key, 4)

    emb_table = jax.random.normal(k_emb, (V, E), dtype=jnp.float32)   # "embeddings"
    ids = jax.random.randint(k_ids, (B, L), 0, V, dtype=jnp.int32)    # forward input x
    w = jax.random.normal(k_w, (5, E), dtype=jnp.float32) * 0.1       # classify.weight
    b = jax.random.normal(k_b, (5,), dtype=jnp.float32) * 0.1         # classify.bias

    forward = make_bow_forward(emb_table, w, b)
    out = jax.block_until_ready(forward(ids))

    # Pure-JAX reference of the PyTorch forward (embed -> sum -> linear).
    ref = jnp.take(emb_table, ids, axis=0).sum(axis=1) @ w.T + b
    assert out.shape == (B, 5)
    # Fusion reassociates the matmul (emb@W.T precomputed); tolerance covers the
    # f32 rounding difference of the reassociated order.
    assert jnp.allclose(out, ref, atol=1e-3, rtol=1e-3), "mismatch vs reference"

    print("KERNEL_OK")
</pallas_src>

<mosaic_0001>
module attributes {stable_mosaic.version = 11 : i64} {
  func.func @bow_kernel(%arg0: i32, %arg1: memref<8x8xi32, #tpu.memory_space<smem>>, %arg2: memref<64x128xf32, #tpu.memory_space<vmem>>, %arg3: memref<1x128xf32, #tpu.memory_space<vmem>>, %arg4: memref<8x128xf32, #tpu.memory_space<vmem>>) attributes {dimension_semantics = [#tpu.dimension_semantics<parallel>], iteration_bounds = array<i64: 1>, scalar_prefetch = 1 : i64, scratch_operands = 0 : i64, tpu.core_type = #tpu.core_type<tc>, window_params = [{pipeline_mode = #tpu.pipeline_mode<synchronous>, transform_indices = @transform_0, window_bounds = array<i64: 64, 128>}, {pipeline_mode = #tpu.pipeline_mode<synchronous>, transform_indices = @transform_1, window_bounds = array<i64: 1, 128>}, {transform_indices = @transform_2, window_bounds = array<i64: 8, 128>}]} {
    %c8_i32 = arith.constant 8 : i32
    %0 = arith.muli %arg0, %c8_i32 : i32
    %c0 = arith.constant 0 : index
    %c0_0 = arith.constant 0 : index
    %1 = vector.load %arg3[%c0, %c0_0] : memref<1x128xf32, #tpu.memory_space<vmem>>, vector<1x128xf32>
    %c0_i32 = arith.constant 0 : i32
    %c8_i32_1 = arith.constant 8 : i32
    %2 = arith.addi %c0_i32, %c8_i32_1 : i32
    %c1_i32 = arith.constant 1 : i32
    scf.for %arg5 = %c0_i32 to %2 step %c1_i32  : i32 {
      %3 = arith.addi %0, %arg5 : i32
      %4 = arith.index_cast %3 : i32 to index
      %c0_3 = arith.constant 0 : index
      %5 = memref.load %arg1[%4, %c0_3] : memref<8x8xi32, #tpu.memory_space<smem>>
      %c0_i32_4 = arith.constant 0 : i32
      %c63_i32 = arith.constant 63 : i32
      %6 = arith.maxsi %c0_i32_4, %5 : i32
      %7 = arith.minsi %c63_i32, %6 : i32
      %8 = arith.index_cast %7 : i32 to index
      %c0_5 = arith.constant 0 : index
      %9 = vector.load %arg2[%8, %c0_5] : memref<64x128xf32, #tpu.memory_space<vmem>>, vector<1x128xf32>
      %10 = arith.addf %1, %9 : vector<1x128xf32>
      %11 = arith.addi %0, %arg5 : i32
      %12 = arith.index_cast %11 : i32 to index
      %c1 = arith.constant 1 : index
      %13 = memref.load %arg1[%12, %c1] : memref<8x8xi32, #tpu.memory_space<smem>>
      %c0_i32_6 = arith.constant 0 : i32
      %c63_i32_7 = arith.constant 63 : i32
      %14 = arith.maxsi %c0_i32_6, %13 : i32
      %15 = arith.minsi %c63_i32_7, %14 : i32
      %16 = arith.index_cast %15 : i32 to index
      %c0_8 = arith.constant 0 : index
      %17 = vector.load %arg2[%16, %c0_8] : memref<64x128xf32, #tpu.memory_space<vmem>>, vector<1x128xf32>
      %18 = arith.addf %10, %17 : vector<1x128xf32>
      %19 = arith.addi %0, %arg5 : i32
      %20 = arith.index_cast %19 : i32 to index
      %c2 = arith.constant 2 : index
      %21 = memref.load %arg1[%20, %c2] : memref<8x8xi32, #tpu.memory_space<smem>>
      %c0_i32_9 = arith.constant 0 : i32
      %c63_i32_10 = arith.constant 63 : i32
      %22 = arith.maxsi %c0_i32_9, %21 : i32
      %23 = arith.minsi %c63_i32_10, %22 : i32
      %24 = arith.index_cast %23 : i32 to index
      %c0_11 = arith.constant 0 : index
      %25 = vector.load %arg2[%24, %c0_11] : memref<64x128xf32, #tpu.memory_space<vmem>>, vector<1x128xf32>
      %26 = arith.addf %18, %25 : vector<1x128xf32>
      %27 = arith.addi %0, %arg5 : i32
      %28 = arith.index_cast %27 : i32 to index
      %c3 = arith.constant 3 : index
      %29 = memref.load %arg1[%28, %c3] : memref<8x8xi32, #tpu.memory_space<smem>>
      %c0_i32_12 = arith.constant 0 : i32
      %c63_i32_13 = arith.constant 63 : i32
      %30 = arith.maxsi %c0_i32_12, %29 : i32
      %31 = arith.minsi %c63_i32_13, %30 : i32
      %32 = arith.index_cast %31 : i32 to index
      %c0_14 = arith.constant 0 : index
      %33 = vector.load %arg2[%32, %c0_14] : memref<64x128xf32, #tpu.memory_space<vmem>>, vector<1x128xf32>
      %34 = arith.addf %26, %33 : vector<1x128xf32>
      %35 = arith.addi %0, %arg5 : i32
      %36 = arith.index_cast %35 : i32 to index
      %c4 = arith.constant 4 : index
      %37 = memref.load %arg1[%36, %c4] : memref<8x8xi32, #tpu.memory_space<smem>>
      %c0_i32_15 = arith.constant 0 : i32
      %c63_i32_16 = arith.constant 63 : i32
      %38 = arith.maxsi %c0_i32_15, %37 : i32
      %39 = arith.minsi %c63_i32_16, %38 : i32
      %40 = arith.index_cast %39 : i32 to index
      %c0_17 = arith.constant 0 : index
      %41 = vector.load %arg2[%40, %c0_17] : memref<64x128xf32, #tpu.memory_space<vmem>>, vector<1x128xf32>
      %42 = arith.addf %34, %41 : vector<1x128xf32>
      %43 = arith.addi %0, %arg5 : i32
      %44 = arith.index_cast %43 : i32 to index
      %c5 = arith.constant 5 : index
      %45 = memref.load %arg1[%44, %c5] : memref<8x8xi32, #tpu.memory_space<smem>>
      %c0_i32_18 = arith.constant 0 : i32
      %c63_i32_19 = arith.constant 63 : i32
      %46 = arith.maxsi %c0_i32_18, %45 : i32
      %47 = arith.minsi %c63_i32_19, %46 : i32
      %48 = arith.index_cast %47 : i32 to index
      %c0_20 = arith.constant 0 : index
      %49 = vector.load %arg2[%48, %c0_20] : memref<64x128xf32, #tpu.memory_space<vmem>>, vector<1x128xf32>
      %50 = arith.addf %42, %49 : vector<1x128xf32>
      %51 = arith.addi %0, %arg5 : i32
      %52 = arith.index_cast %51 : i32 to index
      %c6 = arith.constant 6 : index
      %53 = memref.load %arg1[%52, %c6] : memref<8x8xi32, #tpu.memory_space<smem>>
      %c0_i32_21 = arith.constant 0 : i32
      %c63_i32_22 = arith.constant 63 : i32
      %54 = arith.maxsi %c0_i32_21, %53 : i32
      %55 = arith.minsi %c63_i32_22, %54 : i32
      %56 = arith.index_cast %55 : i32 to index
      %c0_23 = arith.constant 0 : index
      %57 = vector.load %arg2[%56, %c0_23] : memref<64x128xf32, #tpu.memory_space<vmem>>, vector<1x128xf32>
      %58 = arith.addf %50, %57 : vector<1x128xf32>
      %59 = arith.addi %0, %arg5 : i32
      %60 = arith.index_cast %59 : i32 to index
      %c7 = arith.constant 7 : index
      %61 = memref.load %arg1[%60, %c7] : memref<8x8xi32, #tpu.memory_space<smem>>
      %c0_i32_24 = arith.constant 0 : i32
      %c63_i32_25 = arith.constant 63 : i32
      %62 = arith.maxsi %c0_i32_24, %61 : i32
      %63 = arith.minsi %c63_i32_25, %62 : i32
      %64 = arith.index_cast %63 : i32 to index
      %c0_26 = arith.constant 0 : index
      %65 = vector.load %arg2[%64, %c0_26] : memref<64x128xf32, #tpu.memory_space<vmem>>, vector<1x128xf32>
      %66 = arith.addf %58, %65 : vector<1x128xf32>
      %67 = arith.index_cast %arg5 : i32 to index
      %c0_27 = arith.constant 0 : index
      %68 = vector.load %arg4[%67, %c0_27] : memref<8x128xf32, #tpu.memory_space<vmem>>, vector<1x128xf32>
      tpu.vector_store %arg4[%67, %c0_27], %66 {strides = array<i32>} : memref<8x128xf32, #tpu.memory_space<vmem>>, vector<1x128xf32>,
    }
    %c8_i32_2 = arith.constant 8 : i32
    return
  }
  func.func @transform_0(%arg0: i32, %arg1: memref<8x8xi32, #tpu.memory_space<smem>>) -> (i32, i32) {
    %c0_i32 = arith.constant 0 : i32
    %c0_i32_0 = arith.constant 0 : i32
    %c0_i32_1 = arith.constant 0 : i32
    return %c0_i32, %c0_i32_0 : i32, i32
  }
  func.func @transform_1(%arg0: i32, %arg1: memref<8x8xi32, #tpu.memory_space<smem>>) -> (i32, i32) {
    %c0_i32 = arith.constant 0 : i32
    %c0_i32_0 = arith.constant 0 : i32
    %c0_i32_1 = arith.constant 0 : i32
    return %c0_i32, %c0_i32_0 : i32, i32
  }
  func.func @transform_2(%arg0: i32, %arg1: memref<8x8xi32, #tpu.memory_space<smem>>) -> (i32, i32) {
    %c0_i32 = arith.constant 0 : i32
    %c0_i32_0 = arith.constant 0 : i32
    return %arg0, %c0_i32 : i32, i32
  }
}

</mosaic_0001>

<llo_original>
// kernel: forward.1
$region0: #{forward.1}
  #allocation0 [shape = 'u32[]', space=smem, size = 0x4, offset = 0x4, fixed_abs, tag = 'smem constant byte address 0x4 - core index']
  #allocation1 [shape = 'u32[144,128]{1,0:T(1,128)}', space=vmem, size = 0x12000, scoped, tag = 'internal scratch']
  #allocation2 [shape = 's32[1]{0}', space=sflag, size = 0x4, scoped, tag = 'scoped memory for forward.1']
  #allocation3 [shape = 'u8[4096]{0}', space=smem, size = 0x1000, scoped, tag = 'prefetched SMEM operand 0']
  %s0 = inlined_call_operand.vmem [shape: s32[8,8], index: 0, kind: input, shape index: {}]
  %s1 = inlined_call_operand.hbm [shape: f32[64,128], index: 1, kind: input, shape index: {}]
  %s2 = inlined_call_operand.vmem [shape: f32[1,128], index: 2, kind: input, shape index: {}]
  %s3 = inlined_call_operand.vmem [shape: f32[8,128], index: 3, kind: output, shape index: {}]
  %s4 = sld [smem:[#allocation0]]
  $region29: #{forward.1} parent=0
    _
  %s6 = ssub.s32 1, %s4
  %s7 = scalar_select 0, %s6, %s4
  %s8 = sshll.u32 %s0, 4
  %s9 = int_to_ptr.vmem [resolvable:$true] %s8
  %11 = dma.vmem_to_smem %s9, 128, [#allocation3], [#allocation2]
  %12 = dma.done [#allocation2], 128
  %13 = sfence
  $region1: #{forward.1} parent=0
    #allocation4 [shape = 'u8[32768]{0}', space=vmem, size = 0x8000, scoped, tag = 'input window, operand 1, single buffered']
    #allocation5 [shape = 's32[1]{0}', space=sflag, size = 0x4, scoped, tag = 'scoped memory for forward.1']
    %14 = vsyncpa [#allocation5], 0
    // Predicated region
    $region2: #{forward.1} parent=1 // pred_check
      _
    $region3: #{forward.1} parent=1 // pred_check_branch
      %16 = sbr.rel (0) target = $region5
    $region4: #{forward.1} parent=1 // pred_region
      %s18 = ssub.s32 1024, 1024
      %19 = vsyncadd [#allocation5], %s18
      %s20 = sshll.u32 [#allocation4], 4
      %s21 = int_to_ptr.vmem [resolvable:$true] %s20
      %26 = dma.hbm_to_vmem [thread:$0]  %s1, 1024, %s21, [#allocation5], 128, 128, 8
    $region5: #{forward.1} parent=1 // pred_fallthru
      _
    // Predicated region
    $region6: #{forward.1} parent=1 // pred_check
      _
    $region7: #{forward.1} parent=1 // pred_check_branch
      %28 = sbr.rel (0) target = $region9
    $region8: #{forward.1} parent=1 // pred_region
      _
    $region9: #{forward.1} parent=1 // pred_fallthru
      _
    // Predicated region
    $region10: #{forward.1} parent=1 // pred_check
      _
    $region11: #{forward.1} parent=1 // pred_check_branch
      %30 = sbr.rel (0) target = $region13
    $region12: #{forward.1} parent=1 // pred_region
      %31 = dma.done [#allocation5], 1024
    $region13: #{forward.1} parent=1 // pred_fallthru
      _
    %s32 = smul.u32 0, 8
    %v33 = vld [vmem:[%s2] sm:$0x1]
    loop: start=0, step=1, limit=8
    $region14: #{forward.1} parent=1 // loop_pre_header
      _
    $region15: #{forward.1} parent=1 // loop_header
      %s35 = sphi 0, %s39
      %p36 = scmp.ge.s32.totalorder %s35, 8
    $region16: #{forward.1} parent=1 // loop_header_branch
      %38 = sbr.rel (%p36) target = $region20
    $region17: #{forward.1} parent=1 // loop_body
      %s40 = sadd.s32 %s32, %s35
      %s41 = smul.u32 %s40, 128
      %s42 = sld [smem:[#allocation3 + %s41]]
      %p43 = scmp.gt.s32.totalorder %s42, 0
      %s44 = scalar_select %p43, %s42, 0
      %p45 = scmp.lt.s32.totalorder %s44, 63
      %s46 = scalar_select %p45, %s44, 63
      %s47 = scalar_lea.vmem [#allocation4], %s46
      %v48 = vld [vmem:[%s47] sm:$0x1]
      %v49 = vadd.f32 %v33, %v48
      %s50 = sadd.s32 %s41, 1
      %s51 = sld [smem:[#allocation3 + %s50]]
      %p52 = scmp.gt.s32.totalorder %s51, 0
      %s53 = scalar_select %p52, %s51, 0
      %p54 = scmp.lt.s32.totalorder %s53, 63
      %s55 = scalar_select %p54, %s53, 63
      %s56 = scalar_lea.vmem [#allocation4], %s55
      %v57 = vld [vmem:[%s56] sm:$0x1]
      %v58 = vadd.f32 %v49, %v57
      %s59 = sadd.s32 %s41, 2
      %s60 = sld [smem:[#allocation3 + %s59]]
      %p61 = scmp.gt.s32.totalorder %s60, 0
      %s62 = scalar_select %p61, %s60, 0
      %p63 = scmp.lt.s32.totalorder %s62, 63
      %s64 = scalar_select %p63, %s62, 63
      %s65 = scalar_lea.vmem [#allocation4], %s64
      %v66 = vld [vmem:[%s65] sm:$0x1]
      %v67 = vadd.f32 %v58, %v66
      %s68 = sadd.s32 %s41, 3
      %s69 = sld [smem:[#allocation3 + %s68]]
      %p70 = scmp.gt.s32.totalorder %s69, 0
      %s71 = scalar_select %p70, %s69, 0
      %p72 = scmp.lt.s32.totalorder %s71, 63
      %s73 = scalar_select %p72, %s71, 63
      %s74 = scalar_lea.vmem [#allocation4], %s73
      %v75 = vld [vmem:[%s74] sm:$0x1]
      %v76 = vadd.f32 %v67, %v75
      %s77 = sadd.s32 %s41, 4
      %s78 = sld [smem:[#allocation3 + %s77]]
      %p79 = scmp.gt.s32.totalorder %s78, 0
      %s80 = scalar_select %p79, %s78, 0
      %p81 = scmp.lt.s32.totalorder %s80, 63
      %s82 = scalar_select %p81, %s80, 63
      %s83 = scalar_lea.vmem [#allocation4], %s82
      %v84 = vld [vmem:[%s83] sm:$0x1]
      %v85 = vadd.f32 %v76, %v84
      %s86 = sadd.s32 %s41, 5
      %s87 = sld [smem:[#allocation3 + %s86]]
      %p88 = scmp.gt.s32.totalorder %s87, 0
      %s89 = scalar_select %p88, %s87, 0
      %p90 = scmp.lt.s32.totalorder %s89, 63
      %s91 = scalar_select %p90, %s89, 63
      %s92 = scalar_lea.vmem [#allocation4], %s91
      %v93 = vld [vmem:[%s92] sm:$0x1]
      %v94 = vadd.f32 %v85, %v93
      %s95 = sadd.s32 %s41, 6
      %s96 = sld [smem:[#allocation3 + %s95]]
      %p97 = scmp.gt.s32.totalorder %s96, 0
      %s98 = scalar_select %p97, %s96, 0
      %p99 = scmp.lt.s32.totalorder %s98, 63
      %s100 = scalar_select %p99, %s98, 63
      %s101 = scalar_lea.vmem [#allocation4], %s100
      %v102 = vld [vmem:[%s101] sm:$0x1]
      %v103 = vadd.f32 %v94, %v102
      %s104 = sadd.s32 %s41, 7
      %s105 = sld [smem:[#allocation3 + %s104]]
      %p106 = scmp.gt.s32.totalorder %s105, 0
      %s107 = scalar_select %p106, %s105, 0
      %p108 = scmp.lt.s32.totalorder %s107, 63
      %s109 = scalar_select %p108, %s107, 63
      %s110 = scalar_lea.vmem [#allocation4], %s109
      %v111 = vld [vmem:[%s110] sm:$0x1]
      %v112 = vadd.f32 %v103, %v111
      %s113 = scalar_lea.vmem %s3, %s35
      %114 = vst [vmem:[%s113] sm:$0x1] %v112
    $region18: #{forward.1} parent=1 // loop_footer
      %s39 = sadd.s32 1, %s35
    $region19: #{forward.1} parent=1 // loop_footer_branch
      %34 = sbr.rel target = $region15
    $region20: #{forward.1} parent=1 // loop_exit
      _
    // Predicated region
    $region21: #{forward.1} parent=1 // pred_check
      _
    $region22: #{forward.1} parent=1 // pred_check_branch
      %116 = sbr.rel (0) target = $region24
    $region23: #{forward.1} parent=1 // pred_region
      _
    $region24: #{forward.1} parent=1 // pred_fallthru
      _
    // Predicated region
    $region25: #{forward.1} parent=1 // pred_check
      _
    $region26: #{forward.1} parent=1 // pred_check_branch
      %118 = sbr.rel (0) target = $region28
    $region27: #{forward.1} parent=1 // pred_region
      _
    $region28: #{forward.1} parent=1 // pred_fallthru
      _
    %119 = vsyncpa [#allocation5], 1

</llo_original>
